<compile_context>
chip_gen: v7x
topology: tpu7x:2x2x1
jax: 0.10.0
libtpu: 0.0.40
codegen_flags: <defaults>
</compile_context>

<pallas_src>
import jax
import jax.numpy as jnp
from jax.experimental import pallas as pl
from jax.experimental.pallas import tpu as pltpu

# ---- hyper-parameters implied by the PyTorch script ----
Batch_Size = 2
Hidden_Size = 50
Input_Features = 3        # len(X_Train_set[0]) in the original script
Number_Layers = 1
Number_Outputs = 2
Seq_Len = 7

# ---- TPU-friendly padded tile sizes (lane-dense, unmasked stores) ----
B_PAD = 8      # sublane-pad batch
F_PAD = 128    # lane-pad input features
H_PAD = 128    # lane-pad hidden size
O_PAD = 128    # lane-pad outputs


def rnn_linear_kernel(x_ref, wih_ref, whh_ref, b_ref, wlin_ref, blin_ref,
                      out_ref):
    """Elman RNN (ReLU) + final Linear on the last hidden state.

    x_ref:    (T*B_PAD, F_PAD)  time-major, zero-padded input
    wih_ref:  (F_PAD, H_PAD)    input->hidden weight (transposed, padded)
    whh_ref:  (H_PAD, H_PAD)    hidden->hidden weight (transposed, padded)
    b_ref:    (1, H_PAD)        folded bias b_ih + b_hh (padded)
    wlin_ref: (H_PAD, O_PAD)    linear weight (transposed, padded)
    blin_ref: (1, O_PAD)        linear bias (padded)
    out_ref:  (B_PAD, O_PAD)    padded output
    """
    Bp = out_ref.shape[0]
    T = x_ref.shape[0] // Bp
    Hp = whh_ref.shape[0]

    # (1) Hoisted input projection: one MXU matmul covers all T steps, so the
    #     serial chain only contains h@W_hh + add + relu per step.
    xproj = (jnp.dot(x_ref[...], wih_ref[...],
                     preferred_element_type=jnp.float32)
             + b_ref[...])                                    # (T*Bp, Hp)

    whh = whh_ref[...]                                        # weight as a value

    # (2)+(3) Fully-unrolled recurrence with h kept in registers.
    h = jnp.zeros((Bp, Hp), jnp.float32)
    for t in range(T):                                        # T is static
        pre = xproj[t * Bp:(t + 1) * Bp, :] + jnp.dot(
            h, whh, preferred_element_type=jnp.float32)
        h = jnp.maximum(pre, 0.0)                             # relu

    # Output = linear(h_T); (8,128) lane-dense unmasked store.
    out_ref[...] = (jnp.dot(h, wlin_ref[...],
                            preferred_element_type=jnp.float32)
                    + blin_ref[...])


def _pad2(a, rows, cols):
    r, c = a.shape
    return jnp.pad(a, ((0, rows - r), (0, cols - c)))


@jax.jit
def model_forward(x_btf, w_ih, w_hh, b_ih, b_hh, w_lin, b_lin):
    """x_btf: (B, T, F) float32 (PyTorch batch_first convention)."""
    B, T, F = x_btf.shape
    H = w_ih.shape[0]
    O = w_lin.shape[0]

    x32 = x_btf.astype(jnp.float32)
    # Time-major + zero-pad to lane-dense tiles, then flatten so step-t rows
    # are the contiguous slice [t*B_PAD, (t+1)*B_PAD) of (T*B_PAD, F_PAD).
    x_tm = jnp.transpose(x32, (1, 0, 2))                          # (T, B, F)
    x_tm = jnp.pad(x_tm, ((0, 0), (0, B_PAD - B), (0, F_PAD - F)))
    x2d = x_tm.reshape(T * B_PAD, F_PAD)

    wih_p = _pad2(w_ih.T.astype(jnp.float32), F_PAD, H_PAD)       # (F_PAD,H_PAD)
    whh_p = _pad2(w_hh.T.astype(jnp.float32), H_PAD, H_PAD)       # (H_PAD,H_PAD)
    # (4) Fold the two RNN biases into one.
    b_p = _pad2((b_ih + b_hh).astype(jnp.float32).reshape(1, H), 1, H_PAD)
    wlin_p = _pad2(w_lin.T.astype(jnp.float32), H_PAD, O_PAD)     # (H_PAD,O_PAD)
    blin_p = _pad2(b_lin.astype(jnp.float32).reshape(1, O), 1, O_PAD)

    vmem = pl.BlockSpec(memory_space=pltpu.MemorySpace.VMEM)

    out_p = pl.pallas_call(
        rnn_linear_kernel,
        out_shape=jax.ShapeDtypeStruct((B_PAD, O_PAD), jnp.float32),
        in_specs=[vmem] * 6,
        out_specs=vmem,
    )(x2d, wih_p, whh_p, b_p, wlin_p, blin_p)

    return out_p[:B, :O]


def reference_forward(x_btf, w_ih, w_hh, b_ih, b_hh, w_lin, b_lin):
    """Pure-JAX reference matching torch.nn.RNN(relu) + Linear."""
    B, T, F = x_btf.shape
    H = w_ih.shape[0]
    h = jnp.zeros((B, H), jnp.float32)
    for t in range(T):
        xt = x_btf[:, t, :]
        h = jnp.maximum(xt @ w_ih.T + b_ih + h @ w_hh.T + b_hh, 0.0)
    return h @ w_lin.T + b_lin


if __name__ == "__main__":
    key = jax.random.PRNGKey(0)
    k_x, k1, k2, k3, k4, k5, k6 = jax.random.split(key, 7)

    # deterministic "PyTorch-default-style" init: U(-1/sqrt(H), 1/sqrt(H))
    bound = 1.0 / jnp.sqrt(jnp.float32(Hidden_Size))
    w_ih = jax.random.uniform(k1, (Hidden_Size, Input_Features), jnp.float32, -bound, bound)
    w_hh = jax.random.uniform(k2, (Hidden_Size, Hidden_Size), jnp.float32, -bound, bound)
    b_ih = jax.random.uniform(k3, (Hidden_Size,), jnp.float32, -bound, bound)
    b_hh = jax.random.uniform(k4, (Hidden_Size,), jnp.float32, -bound, bound)
    w_lin = jax.random.uniform(k5, (Number_Outputs, Hidden_Size), jnp.float32, -bound, bound)
    b_lin = jax.random.uniform(k6, (Number_Outputs,), jnp.float32, -bound, bound)

    # input: (Batch, Seq, Input_Features), batch_first as in the PyTorch module
    x = jax.random.uniform(k_x, (Batch_Size, Seq_Len, Input_Features), jnp.float32)

    out = model_forward(x, w_ih, w_hh, b_ih, b_hh, w_lin, b_lin)
    out = jax.block_until_ready(out)

    ref = reference_forward(x, w_ih, w_hh, b_ih, b_hh, w_lin, b_lin)
    assert out.shape == (Batch_Size, Number_Outputs)
    assert jnp.allclose(out, ref, rtol=1e-3, atol=1e-3), (out, ref)

    print("KERNEL_OK")
</pallas_src>

<mosaic_0001>
module attributes {stable_mosaic.version = 11 : i64} {
  func.func @rnn_linear_kernel(%arg0: memref<56x128xf32, #tpu.memory_space<vmem>>, %arg1: memref<128x128xf32, #tpu.memory_space<vmem>>, %arg2: memref<128x128xf32, #tpu.memory_space<vmem>>, %arg3: memref<1x128xf32, #tpu.memory_space<vmem>>, %arg4: memref<128x128xf32, #tpu.memory_space<vmem>>, %arg5: memref<1x128xf32, #tpu.memory_space<vmem>>, %arg6: memref<8x128xf32, #tpu.memory_space<vmem>>) attributes {dimension_semantics = [], scalar_prefetch = 0 : i64, scratch_operands = 0 : i64, tpu.core_type = #tpu.core_type<tc>} {
    %c0 = arith.constant 0 : index
    %c0_0 = arith.constant 0 : index
    %0 = vector.load %arg0[%c0, %c0_0] : memref<56x128xf32, #tpu.memory_space<vmem>>, vector<56x128xf32>
    %c0_1 = arith.constant 0 : index
    %c0_2 = arith.constant 0 : index
    %1 = vector.load %arg1[%c0_1, %c0_2] : memref<128x128xf32, #tpu.memory_space<vmem>>, vector<128x128xf32>
    %cst = arith.constant dense<0.000000e+00> : vector<56x128xf32>
    %2 = tpu.matmul %0, %1, %cst {dimension_numbers = #tpu.dot_dimension_numbers<[1], [0], [0], [1], [0, 0, 1, 1], [], []>} : vector<56x128xf32>, vector<128x128xf32>, vector<56x128xf32> -> vector<56x128xf32>
    %c0_3 = arith.constant 0 : index
    %c0_4 = arith.constant 0 : index
    %3 = vector.load %arg3[%c0_3, %c0_4] : memref<1x128xf32, #tpu.memory_space<vmem>>, vector<1x128xf32>
    %4 = vector.broadcast %3 : vector<1x128xf32> to vector<56x128xf32>
    %5 = arith.addf %2, %4 : vector<56x128xf32>
    %c0_5 = arith.constant 0 : index
    %c0_6 = arith.constant 0 : index
    %6 = vector.load %arg2[%c0_5, %c0_6] : memref<128x128xf32, #tpu.memory_space<vmem>>, vector<128x128xf32>
    %cst_7 = arith.constant 0.000000e+00 : f32
    %7 = vector.broadcast %cst_7 : f32 to vector<8x128xf32>
    %8 = vector.extract_strided_slice %5 {offsets = [0, 0], sizes = [8, 128], strides = [1, 1]} : vector<56x128xf32> to vector<8x128xf32>
    %cst_8 = arith.constant dense<0.000000e+00> : vector<8x128xf32>
    %9 = tpu.matmul %7, %6, %cst_8 {dimension_numbers = #tpu.dot_dimension_numbers<[1], [0], [0], [1], [0, 0, 1, 1], [], []>} : vector<8x128xf32>, vector<128x128xf32>, vector<8x128xf32> -> vector<8x128xf32>
    %10 = arith.addf %8, %9 : vector<8x128xf32>
    %cst_9 = arith.constant 0.000000e+00 : f32
    %11 = vector.broadcast %cst_9 : f32 to vector<8x128xf32>
    %12 = arith.maximumf %10, %11 : vector<8x128xf32>
    %13 = vector.extract_strided_slice %5 {offsets = [8, 0], sizes = [8, 128], strides = [1, 1]} : vector<56x128xf32> to vector<8x128xf32>
    %cst_10 = arith.constant dense<0.000000e+00> : vector<8x128xf32>
    %14 = tpu.matmul %12, %6, %cst_10 {dimension_numbers = #tpu.dot_dimension_numbers<[1], [0], [0], [1], [0, 0, 1, 1], [], []>} : vector<8x128xf32>, vector<128x128xf32>, vector<8x128xf32> -> vector<8x128xf32>
    %15 = arith.addf %13, %14 : vector<8x128xf32>
    %cst_11 = arith.constant 0.000000e+00 : f32
    %16 = vector.broadcast %cst_11 : f32 to vector<8x128xf32>
    %17 = arith.maximumf %15, %16 : vector<8x128xf32>
    %18 = vector.extract_strided_slice %5 {offsets = [16, 0], sizes = [8, 128], strides = [1, 1]} : vector<56x128xf32> to vector<8x128xf32>
    %cst_12 = arith.constant dense<0.000000e+00> : vector<8x128xf32>
    %19 = tpu.matmul %17, %6, %cst_12 {dimension_numbers = #tpu.dot_dimension_numbers<[1], [0], [0], [1], [0, 0, 1, 1], [], []>} : vector<8x128xf32>, vector<128x128xf32>, vector<8x128xf32> -> vector<8x128xf32>
    %20 = arith.addf %18, %19 : vector<8x128xf32>
    %cst_13 = arith.constant 0.000000e+00 : f32
    %21 = vector.broadcast %cst_13 : f32 to vector<8x128xf32>
    %22 = arith.maximumf %20, %21 : vector<8x128xf32>
    %23 = vector.extract_strided_slice %5 {offsets = [24, 0], sizes = [8, 128], strides = [1, 1]} : vector<56x128xf32> to vector<8x128xf32>
    %cst_14 = arith.constant dense<0.000000e+00> : vector<8x128xf32>
    %24 = tpu.matmul %22, %6, %cst_14 {dimension_numbers = #tpu.dot_dimension_numbers<[1], [0], [0], [1], [0, 0, 1, 1], [], []>} : vector<8x128xf32>, vector<128x128xf32>, vector<8x128xf32> -> vector<8x128xf32>
    %25 = arith.addf %23, %24 : vector<8x128xf32>
    %cst_15 = arith.constant 0.000000e+00 : f32
    %26 = vector.broadcast %cst_15 : f32 to vector<8x128xf32>
    %27 = arith.maximumf %25, %26 : vector<8x128xf32>
    %28 = vector.extract_strided_slice %5 {offsets = [32, 0], sizes = [8, 128], strides = [1, 1]} : vector<56x128xf32> to vector<8x128xf32>
    %cst_16 = arith.constant dense<0.000000e+00> : vector<8x128xf32>
    %29 = tpu.matmul %27, %6, %cst_16 {dimension_numbers = #tpu.dot_dimension_numbers<[1], [0], [0], [1], [0, 0, 1, 1], [], []>} : vector<8x128xf32>, vector<128x128xf32>, vector<8x128xf32> -> vector<8x128xf32>
    %30 = arith.addf %28, %29 : vector<8x128xf32>
    %cst_17 = arith.constant 0.000000e+00 : f32
    %31 = vector.broadcast %cst_17 : f32 to vector<8x128xf32>
    %32 = arith.maximumf %30, %31 : vector<8x128xf32>
    %33 = vector.extract_strided_slice %5 {offsets = [40, 0], sizes = [8, 128], strides = [1, 1]} : vector<56x128xf32> to vector<8x128xf32>
    %cst_18 = arith.constant dense<0.000000e+00> : vector<8x128xf32>
    %34 = tpu.matmul %32, %6, %cst_18 {dimension_numbers = #tpu.dot_dimension_numbers<[1], [0], [0], [1], [0, 0, 1, 1], [], []>} : vector<8x128xf32>, vector<128x128xf32>, vector<8x128xf32> -> vector<8x128xf32>
    %35 = arith.addf %33, %34 : vector<8x128xf32>
    %cst_19 = arith.constant 0.000000e+00 : f32
    %36 = vector.broadcast %cst_19 : f32 to vector<8x128xf32>
    %37 = arith.maximumf %35, %36 : vector<8x128xf32>
    %38 = vector.extract_strided_slice %5 {offsets = [48, 0], sizes = [8, 128], strides = [1, 1]} : vector<56x128xf32> to vector<8x128xf32>
    %cst_20 = arith.constant dense<0.000000e+00> : vector<8x128xf32>
    %39 = tpu.matmul %37, %6, %cst_20 {dimension_numbers = #tpu.dot_dimension_numbers<[1], [0], [0], [1], [0, 0, 1, 1], [], []>} : vector<8x128xf32>, vector<128x128xf32>, vector<8x128xf32> -> vector<8x128xf32>
    %40 = arith.addf %38, %39 : vector<8x128xf32>
    %cst_21 = arith.constant 0.000000e+00 : f32
    %41 = vector.broadcast %cst_21 : f32 to vector<8x128xf32>
    %42 = arith.maximumf %40, %41 : vector<8x128xf32>
    %c0_22 = arith.constant 0 : index
    %c0_23 = arith.constant 0 : index
    %43 = vector.load %arg4[%c0_22, %c0_23] : memref<128x128xf32, #tpu.memory_space<vmem>>, vector<128x128xf32>
    %cst_24 = arith.constant dense<0.000000e+00> : vector<8x128xf32>
    %44 = tpu.matmul %42, %43, %cst_24 {dimension_numbers = #tpu.dot_dimension_numbers<[1], [0], [0], [1], [0, 0, 1, 1], [], []>} : vector<8x128xf32>, vector<128x128xf32>, vector<8x128xf32> -> vector<8x128xf32>
    %c0_25 = arith.constant 0 : index
    %c0_26 = arith.constant 0 : index
    %45 = vector.load %arg5[%c0_25, %c0_26] : memref<1x128xf32, #tpu.memory_space<vmem>>, vector<1x128xf32>
    %46 = vector.broadcast %45 : vector<1x128xf32> to vector<8x128xf32>
    %47 = arith.addf %44, %46 : vector<8x128xf32>
    %c0_27 = arith.constant 0 : index
    %c0_28 = arith.constant 0 : index
    %48 = vector.load %arg6[%c0_27, %c0_28] : memref<8x128xf32, #tpu.memory_space<vmem>>, vector<8x128xf32>
    tpu.vector_store %arg6[%c0_27, %c0_28], %47 {strides = array<i32>} : memref<8x128xf32, #tpu.memory_space<vmem>>, vector<8x128xf32>,
    return
  }
}

</mosaic_0001>

<llo_original>
// kernel: model_forward.1
$region0: #{model_forward.1}
  #allocation0 [shape = 'u32[]', space=smem, size = 0x4, offset = 0x4, fixed_abs, tag = 'smem constant byte address 0x4 - core index']
  #allocation1 [shape = 'u32[144,128]{1,0:T(1,128)}', space=vmem, size = 0x12000, scoped, tag = 'internal scratch']
  %s0 = inlined_call_operand.vmem [shape: f32[56,128], index: 0, kind: input, shape index: {}]
  %s1 = inlined_call_operand.vmem [shape: f32[128,128], index: 1, kind: input, shape index: {}]
  %s2 = inlined_call_operand.vmem [shape: f32[128,128], index: 2, kind: input, shape index: {}]
  %s3 = inlined_call_operand.vmem [shape: f32[1,128], index: 3, kind: input, shape index: {}]
  %s4 = inlined_call_operand.vmem [shape: f32[128,128], index: 4, kind: input, shape index: {}]
  %s5 = inlined_call_operand.vmem [shape: f32[1,128], index: 5, kind: input, shape index: {}]
  %s6 = inlined_call_operand.vmem [shape: f32[8,128], index: 6, kind: output, shape index: {}]
  %s7 = sld [smem:[#allocation0]]
  $region34: #{model_forward.1} parent=0
    _
  %s9 = ssub.s32 1, %s7
  %s10 = scalar_select 0, %s9, %s7
  // Predicated region
  $region2: #{model_forward.1} parent=0 // pred_check
    _
  $region3: #{model_forward.1} parent=0 // pred_check_branch
    %12 = sbr.rel (0) target = $region5
  $region4: #{model_forward.1} parent=0 // pred_region
    _
  $region5: #{model_forward.1} parent=0 // pred_fallthru
    _
  // Predicated region
  $region6: #{model_forward.1} parent=0 // pred_check
    _
  $region7: #{model_forward.1} parent=0 // pred_check_branch
    %14 = sbr.rel (0) target = $region9
  $region8: #{model_forward.1} parent=0 // pred_region
    _
  $region9: #{model_forward.1} parent=0 // pred_fallthru
    _
  // Predicated region
  $region10: #{model_forward.1} parent=0 // pred_check
    _
  $region11: #{model_forward.1} parent=0 // pred_check_branch
    %16 = sbr.rel (0) target = $region13
  $region12: #{model_forward.1} parent=0 // pred_region
    _
  $region13: #{model_forward.1} parent=0 // pred_fallthru
    _
  // Predicated region
  $region14: #{model_forward.1} parent=0 // pred_check
    _
  $region15: #{model_forward.1} parent=0 // pred_check_branch
    %18 = sbr.rel (0) target = $region17
  $region16: #{model_forward.1} parent=0 // pred_region
    _
  $region17: #{model_forward.1} parent=0 // pred_fallthru
    _
  // Predicated region
  $region18: #{model_forward.1} parent=0 // pred_check
    _
  $region19: #{model_forward.1} parent=0 // pred_check_branch
    %20 = sbr.rel (0) target = $region21
  $region20: #{model_forward.1} parent=0 // pred_region
    _
  $region21: #{model_forward.1} parent=0 // pred_fallthru
    _
  // Predicated region
  $region22: #{model_forward.1} parent=0 // pred_check
    _
  $region23: #{model_forward.1} parent=0 // pred_check_branch
    %22 = sbr.rel (0) target = $region25
  $region24: #{model_forward.1} parent=0 // pred_region
    _
  $region25: #{model_forward.1} parent=0 // pred_fallthru
    _
  %v23 = vld [vmem:[%s0] sm:$0xff]
  %v24 = vld [vmem:[%s0 + $0x8] sm:$0xff]
  %v25 = vld [vmem:[%s0 + $0x10] sm:$0xff]
  %v26 = vld [vmem:[%s0 + $0x18] sm:$0xff]
  %v27 = vld [vmem:[%s0 + $0x20] sm:$0xff]
  %v28 = vld [vmem:[%s0 + $0x28] sm:$0xff]
  %v29 = vld [vmem:[%s0 + $0x30] sm:$0xff]
  %v30 = vld [vmem:[%s1] sm:$0xff]
  %v31 = vld [vmem:[%s1 + $0x8] sm:$0xff]
  %v32 = vld [vmem:[%s1 + $0x10] sm:$0xff]
  %v33 = vld [vmem:[%s1 + $0x18] sm:$0xff]
  %v34 = vld [vmem:[%s1 + $0x20] sm:$0xff]
  %v35 = vld [vmem:[%s1 + $0x28] sm:$0xff]
  %v36 = vld [vmem:[%s1 + $0x30] sm:$0xff]
  %v37 = vld [vmem:[%s1 + $0x38] sm:$0xff]
  %v38 = vld [vmem:[%s1 + $0x40] sm:$0xff]
  %v39 = vld [vmem:[%s1 + $0x48] sm:$0xff]
  %v40 = vld [vmem:[%s1 + $0x50] sm:$0xff]
  %v41 = vld [vmem:[%s1 + $0x58] sm:$0xff]
  %v42 = vld [vmem:[%s1 + $0x60] sm:$0xff]
  %v43 = vld [vmem:[%s1 + $0x68] sm:$0xff]
  %v44 = vld [vmem:[%s1 + $0x70] sm:$0xff]
  %v45 = vld [vmem:[%s1 + $0x78] sm:$0xff]
  %v46 = vld [vmem:[%s3] sm:$0x1]
  %v48 = vlaneseq
  %v49 = vshrl.u32 %v48, 7
  %v50 = vsub.s32 0, %v49
  %v51 = vrot.slane %v46, %v50
  %53 = vmatprep.subr.mxu0 0.0
  %54 = vmatpush1.msra.mxu0 %v30
  %55 = vmatprep.subr.mxu0 0.0
  %56 = vmatpush1.msra.mxu0 %v31
  %57 = vmatprep.subr.mxu0 0.0
  %58 = vmatpush1.msra.mxu0 %v32
  %59 = vmatprep.subr.mxu0 0.0
  %60 = vmatpush1.msra.mxu0 %v33
  %61 = vmatprep.subr.mxu0 0.0
  %62 = vmatpush1.msra.mxu0 %v34
  %63 = vmatprep.subr.mxu0 0.0
  %64 = vmatpush1.msra.mxu0 %v35
  %65 = vmatprep.subr.mxu0 0.0
  %66 = vmatpush1.msra.mxu0 %v36
  %67 = vmatprep.subr.mxu0 0.0
  %68 = vmatpush1.msra.mxu0 %v37
  %69 = vmatprep.subr.mxu0 0.0
  %70 = vmatpush1.msra.mxu0 %v38
  %71 = vmatprep.subr.mxu0 0.0
  %72 = vmatpush1.msra.mxu0 %v39
  %73 = vmatprep.subr.mxu0 0.0
  %74 = vmatpush1.msra.mxu0 %v40
  %75 = vmatprep.subr.mxu0 0.0
  %76 = vmatpush1.msra.mxu0 %v41
  %77 = vmatprep.subr.mxu0 0.0
  %78 = vmatpush1.msra.mxu0 %v42
  %79 = vmatprep.subr.mxu0 0.0
  %80 = vmatpush1.msra.mxu0 %v43
  %81 = vmatprep.subr.mxu0 0.0
  %82 = vmatpush1.msra.mxu0 %v44
  %83 = vmatprep.subr.mxu0 0.0
  %84 = vmatpush1.msra.mxu0 %v45
  %85 = vmatprep.subr.mxu0 0.0
  %86 = vmatpush1.msra.mxu0 0.0
  %87 = vmatprep.subr.mxu0 0.0
  %88 = vmatpush1.msra.mxu0 0.0
  %89 = vmatprep.subr.mxu0 0.0
  %90 = vmatpush1.msra.mxu0 0.0
  %91 = vmatprep.subr.mxu0 0.0
  %92 = vmatpush1.msra.mxu0 0.0
  %93 = vmatprep.subr.mxu0 0.0
  %94 = vmatpush1.msra.mxu0 0.0
  %95 = vmatprep.subr.mxu0 0.0
  %96 = vmatpush1.msra.mxu0 0.0
  %97 = vmatprep.subr.mxu0 0.0
  %98 = vmatpush1.msra.mxu0 0.0
  %99 = vmatprep.subr.mxu0 0.0
  %100 = vmatpush1.msra.mxu0 0.0
  %101 = vmatprep.subr.mxu0 0.0
  %102 = vmatpush1.msra.mxu0 0.0
  %103 = vmatprep.subr.mxu0 0.0
  %104 = vmatpush1.msra.mxu0 0.0
  %105 = vmatprep.subr.mxu0 0.0
  %106 = vmatpush1.msra.mxu0 0.0
  %107 = vmatprep.subr.mxu0 0.0
  %108 = vmatpush1.msra.mxu0 0.0
  %109 = vmatprep.subr.mxu0 0.0
  %110 = vmatpush1.msra.mxu0 0.0
  %111 = vmatprep.subr.mxu0 0.0
  %112 = vmatpush1.msra.mxu0 0.0
  %113 = vmatprep.subr.mxu0 0.0
  %114 = vmatpush1.msra.mxu0 0.0
  %115 = vmatprep.subr.mxu0 0.0
  %116 = vmatpush1.msra.mxu0 0.0
  %117 = vmatprep.mubr.f32.mxu0 0.0
  %118 = vmatmul.mubr.f32.gmra.mrb[0].mxu0 %v23
  %v119 = vpop.f32.mrb[0].mxu0
  %v120 = vadd.f32 %v51, %v119
  %v121 = vpop.f32.mrb[0].mxu0
  %122 = vmatprep.mubr.f32.mxu0 0.0
  %123 = vmatmul.mubr.f32.gmra.mrb[0].mxu0 %v24
  %v124 = vpop.f32.mrb[0].mxu0
  %v125 = vadd.f32 %v51, %v124
  %v126 = vpop.f32.mrb[0].mxu0
  %127 = vmatprep.mubr.f32.mxu0 0.0
  %128 = vmatmul.mubr.f32.gmra.mrb[0].mxu0 %v25
  %v129 = vpop.f32.mrb[0].mxu0
  %v130 = vadd.f32 %v51, %v129
  %v131 = vpop.f32.mrb[0].mxu0
  %132 = vmatprep.mubr.f32.mxu0 0.0
  %133 = vmatmul.mubr.f32.gmra.mrb[0].mxu0 %v26
  %v134 = vpop.f32.mrb[0].mxu0
  %v135 = vadd.f32 %v51, %v134
  %v136 = vpop.f32.mrb[0].mxu0
  %137 = vmatprep.mubr.f32.mxu0 0.0
  %138 = vmatmul.mubr.f32.gmra.mrb[0].mxu0 %v27
  %v139 = vpop.f32.mrb[0].mxu0
  %v140 = vadd.f32 %v51, %v139
  %v141 = vpop.f32.mrb[0].mxu0
  %142 = vmatprep.mubr.f32.mxu0 0.0
  %143 = vmatmul.mubr.f32.gmra.mrb[0].mxu0 %v28
  %v144 = vpop.f32.mrb[0].mxu0
  %v145 = vadd.f32 %v51, %v144
  %v146 = vpop.f32.mrb[0].mxu0
  %147 = vmatprep.mubr.f32.mxu0 0.0
  %148 = vmatmul.mubr.f32.gmra.mrb[0].mxu0 %v29
  %v149 = vpop.f32.mrb[0].mxu0
  %v150 = vadd.f32 %v51, %v149
  %v151 = vpop.f32.mrb[0].mxu0
  %152 = vdwg.mxu0
  %v153 = vld [vmem:[%s2] sm:$0xff]
  %v154 = vld [vmem:[%s2 + $0x8] sm:$0xff]
  %v155 = vld [vmem:[%s2 + $0x10] sm:$0xff]
  %v156 = vld [vmem:[%s2 + $0x18] sm:$0xff]
  %v157 = vld [vmem:[%s2 + $0x20] sm:$0xff]
  %v158 = vld [vmem:[%s2 + $0x28] sm:$0xff]
  %v159 = vld [vmem:[%s2 + $0x30] sm:$0xff]
  %v160 = vld [vmem:[%s2 + $0x38] sm:$0xff]
  %v161 = vld [vmem:[%s2 + $0x40] sm:$0xff]
  %v162 = vld [vmem:[%s2 + $0x48] sm:$0xff]
  %v163 = vld [vmem:[%s2 + $0x50] sm:$0xff]
  %v164 = vld [vmem:[%s2 + $0x58] sm:$0xff]
  %v165 = vld [vmem:[%s2 + $0x60] sm:$0xff]
  %v166 = vld [vmem:[%s2 + $0x68] sm:$0xff]
  %v167 = vld [vmem:[%s2 + $0x70] sm:$0xff]
  %v168 = vld [vmem:[%s2 + $0x78] sm:$0xff]
  %169 = vmatprep.subr.mxu0 0.0
  %170 = vmatpush1.msra.mxu0 %v153
  %171 = vmatprep.subr.mxu0 0.0
  %172 = vmatpush1.msra.mxu0 %v154
  %173 = vmatprep.subr.mxu0 0.0
  %174 = vmatpush1.msra.mxu0 %v155
  %175 = vmatprep.subr.mxu0 0.0
  %176 = vmatpush1.msra.mxu0 %v156
  %177 = vmatprep.subr.mxu0 0.0
  %178 = vmatpush1.msra.mxu0 %v157
  %179 = vmatprep.subr.mxu0 0.0
  %180 = vmatpush1.msra.mxu0 %v158
  %181 = vmatprep.subr.mxu0 0.0
  %182 = vmatpush1.msra.mxu0 %v159
  %183 = vmatprep.subr.mxu0 0.0
  %184 = vmatpush1.msra.mxu0 %v160
  %185 = vmatprep.subr.mxu0 0.0
  %186 = vmatpush1.msra.mxu0 %v161
  %187 = vmatprep.subr.mxu0 0.0
  %188 = vmatpush1.msra.mxu0 %v162
  %189 = vmatprep.subr.mxu0 0.0
  %190 = vmatpush1.msra.mxu0 %v163
  %191 = vmatprep.subr.mxu0 0.0
  %192 = vmatpush1.msra.mxu0 %v164
  %193 = vmatprep.subr.mxu0 0.0
  %194 = vmatpush1.msra.mxu0 %v165
  %195 = vmatprep.subr.mxu0 0.0
  %196 = vmatpush1.msra.mxu0 %v166
  %197 = vmatprep.subr.mxu0 0.0
  %198 = vmatpush1.msra.mxu0 %v167
  %199 = vmatprep.subr.mxu0 0.0
  %200 = vmatpush1.msra.mxu0 %v168
  %201 = vmatprep.subr.mxu0 0.0
  %202 = vmatpush1.msra.mxu0 0.0
  %203 = vmatprep.subr.mxu0 0.0
  %204 = vmatpush1.msra.mxu0 0.0
  %205 = vmatprep.subr.mxu0 0.0
  %206 = vmatpush1.msra.mxu0 0.0
  %207 = vmatprep.subr.mxu0 0.0
  %208 = vmatpush1.msra.mxu0 0.0
  %209 = vmatprep.subr.mxu0 0.0
  %210 = vmatpush1.msra.mxu0 0.0
  %211 = vmatprep.subr.mxu0 0.0
  %212 = vmatpush1.msra.mxu0 0.0
  %213 = vmatprep.subr.mxu0 0.0
  %214 = vmatpush1.msra.mxu0 0.0
  %215 = vmatprep.subr.mxu0 0.0
  %216 = vmatpush1.msra.mxu0 0.0
  %217 = vmatprep.subr.mxu0 0.0
  %218 = vmatpush1.msra.mxu0 0.0
  %219 = vmatprep.subr.mxu0 0.0
  %220 = vmatpush1.msra.mxu0 0.0
  %221 = vmatprep.subr.mxu0 0.0
  %222 = vmatpush1.msra.mxu0 0.0
  %223 = vmatprep.subr.mxu0 0.0
  %224 = vmatpush1.msra.mxu0 0.0
  %225 = vmatprep.subr.mxu0 0.0
  %226 = vmatpush1.msra.mxu0 0.0
  %227 = vmatprep.subr.mxu0 0.0
  %228 = vmatpush1.msra.mxu0 0.0
  %229 = vmatprep.subr.mxu0 0.0
  %230 = vmatpush1.msra.mxu0 0.0
  %231 = vmatprep.subr.mxu0 0.0
  %232 = vmatpush1.msra.mxu0 0.0
  %233 = vmatprep.mubr.f32.mxu0 0.0
  %234 = vmatmul.mubr.f32.gmra.mrb[0].mxu0 0.0
  %v235 = vpop.f32.mrb[0].mxu0
  %v236 = vadd.f32 0.0, %v235
  %v237 = vpop.f32.mrb[0].mxu0
  %238 = vdwg.mxu0
  %v239 = vadd.f32 %v120, %v236
  %v240 = vmax.f32 %v239, 0.0
  %241 = vmatprep.subr.mxu0 0.0
  %242 = vmatpush1.msra.mxu0 %v153
  %243 = vmatprep.subr.mxu0 0.0
  %244 = vmatpush1.msra.mxu0 %v154
  %245 = vmatprep.subr.mxu0 0.0
  %246 = vmatpush1.msra.mxu0 %v155
  %247 = vmatprep.subr.mxu0 0.0
  %248 = vmatpush1.msra.mxu0 %v156
  %249 = vmatprep.subr.mxu0 0.0
  %250 = vmatpush1.msra.mxu0 %v157
  %251 = vmatprep.subr.mxu0 0.0
  %252 = vmatpush1.msra.mxu0 %v158
  %253 = vmatprep.subr.mxu0 0.0
  %254 = vmatpush1.msra.mxu0 %v159
  %255 = vmatprep.subr.mxu0 0.0
  %256 = vmatpush1.msra.mxu0 %v160
  %257 = vmatprep.subr.mxu0 0.0
  %258 = vmatpush1.msra.mxu0 %v161
  %259 = vmatprep.subr.mxu0 0.0
  %260 = vmatpush1.msra.mxu0 %v162
  %261 = vmatprep.subr.mxu0 0.0
  %262 = vmatpush1.msra.mxu0 %v163
  %263 = vmatprep.subr.mxu0 0.0
  %264 = vmatpush1.msra.mxu0 %v164
  %265 = vmatprep.subr.mxu0 0.0
  %266 = vmatpush1.msra.mxu0 %v165
  %267 = vmatprep.subr.mxu0 0.0
  %268 = vmatpush1.msra.mxu0 %v166
  %269 = vmatprep.subr.mxu0 0.0
  %270 = vmatpush1.msra.mxu0 %v167
  %271 = vmatprep.subr.mxu0 0.0
  %272 = vmatpush1.msra.mxu0 %v168
  %273 = vmatprep.subr.mxu0 0.0
  %274 = vmatpush1.msra.mxu0 0.0
  %275 = vmatprep.subr.mxu0 0.0
  %276 = vmatpush1.msra.mxu0 0.0
  %277 = vmatprep.subr.mxu0 0.0
  %278 = vmatpush1.msra.mxu0 0.0
  %279 = vmatprep.subr.mxu0 0.0
  %280 = vmatpush1.msra.mxu0 0.0
  %281 = vmatprep.subr.mxu0 0.0
  %282 = vmatpush1.msra.mxu0 0.0
  %283 = vmatprep.subr.mxu0 0.0
  %284 = vmatpush1.msra.mxu0 0.0
  %285 = vmatprep.subr.mxu0 0.0
  %286 = vmatpush1.msra.mxu0 0.0
  %287 = vmatprep.subr.mxu0 0.0
  %288 = vmatpush1.msra.mxu0 0.0
  %289 = vmatprep.subr.mxu0 0.0
  %290 = vmatpush1.msra.mxu0 0.0
  %291 = vmatprep.subr.mxu0 0.0
  %292 = vmatpush1.msra.mxu0 0.0
  %293 = vmatprep.subr.mxu0 0.0
  %294 = vmatpush1.msra.mxu0 0.0
  %295 = vmatprep.subr.mxu0 0.0
  %296 = vmatpush1.msra.mxu0 0.0
  %297 = vmatprep.subr.mxu0 0.0
  %298 = vmatpush1.msra.mxu0 0.0
  %299 = vmatprep.subr.mxu0 0.0
  %300 = vmatpush1.msra.mxu0 0.0
  %301 = vmatprep.subr.mxu0 0.0
  %302 = vmatpush1.msra.mxu0 0.0
  %303 = vmatprep.subr.mxu0 0.0
  %304 = vmatpush1.msra.mxu0 0.0
  %305 = vmatprep.mubr.f32.mxu0 0.0
  %306 = vmatmul.mubr.f32.gmra.mrb[0].mxu0 %v240
  %v307 = vpop.f32.mrb[0].mxu0
  %v308 = vadd.f32 0.0, %v307
  %v309 = vpop.f32.mrb[0].mxu0
  %310 = vdwg.mxu0
  %v311 = vadd.f32 %v125, %v308
  %v312 = vmax.f32 %v311, 0.0
  %313 = vmatprep.subr.mxu0 0.0
  %314 = vmatpush1.msra.mxu0 %v153
  %315 = vmatprep.subr.mxu0 0.0
  %316 = vmatpush1.msra.mxu0 %v154
  %317 = vmatprep.subr.mxu0 0.0
  %318 = vmatpush1.msra.mxu0 %v155
  %319 = vmatprep.subr.mxu0 0.0
  %320 = vmatpush1.msra.mxu0 %v156
  %321 = vmatprep.subr.mxu0 0.0
  %322 = vmatpush1.msra.mxu0 %v157
  %323 = vmatprep.subr.mxu0 0.0
  %324 = vmatpush1.msra.mxu0 %v158
  %325 = vmatprep.subr.mxu0 0.0
  %326 = vmatpush1.msra.mxu0 %v159
  %327 = vmatprep.subr.mxu0 0.0
  %328 = vmatpush1.msra.mxu0 %v160
  %329 = vmatprep.subr.mxu0 0.0
  %330 = vmatpush1.msra.mxu0 %v161
  %331 = vmatprep.subr.mxu0 0.0
  %332 = vmatpush1.msra.mxu0 %v162
  %333 = vmatprep.subr.mxu0 0.0
  %334 = vmatpush1.msra.mxu0 %v163
  %335 = vmatprep.subr.mxu0 0.0
  %336 = vmatpush1.msra.mxu0 %v164
  %337 = vmatprep.subr.mxu0 0.0
  %338 = vmatpush1.msra.mxu0 %v165
  %339 = vmatprep.subr.mxu0 0.0
  %340 = vmatpush1.msra.mxu0 %v166
  %341 = vmatprep.subr.mxu0 0.0
  %342 = vmatpush1.msra.mxu0 %v167
  %343 = vmatprep.subr.mxu0 0.0
  %344 = vmatpush1.msra.mxu0 %v168
  %345 = vmatprep.subr.mxu0 0.0
  %346 = vmatpush1.msra.mxu0 0.0
  %347 = vmatprep.subr.mxu0 0.0
  %348 = vmatpush1.msra.mxu0 0.0
  %349 = vmatprep.subr.mxu0 0.0
  %350 = vmatpush1.msra.mxu0 0.0
  %351 = vmatprep.subr.mxu0 0.0
  %352 = vmatpush1.msra.mxu0 0.0
  %353 = vmatprep.subr.mxu0 0.0
  %354 = vmatpush1.msra.mxu0 0.0
  %355 = vmatprep.subr.mxu0 0.0
  %356 = vmatpush1.msra.mxu0 0.0
  %357 = vmatprep.subr.mxu0 0.0
  %358 = vmatpush1.msra.mxu0 0.0
  %359 = vmatprep.subr.mxu0 0.0
  %360 = vmatpush1.msra.mxu0 0.0
  %361 = vmatprep.subr.mxu0 0.0
  %362 = vmatpush1.msra.mxu0 0.0
  %363 = vmatprep.subr.mxu0 0.0
  %364 = vmatpush1.msra.mxu0 0.0
  %365 = vmatprep.subr.mxu0 0.0
  %366 = vmatpush1.msra.mxu0 0.0
  %367 = vmatprep.subr.mxu0 0.0
  %368 = vmatpush1.msra.mxu0 0.0
  %369 = vmatprep.subr.mxu0 0.0
  %370 = vmatpush1.msra.mxu0 0.0
  %371 = vmatprep.subr.mxu0 0.0
  %372 = vmatpush1.msra.mxu0 0.0
  %373 = vmatprep.subr.mxu0 0.0
  %374 = vmatpush1.msra.mxu0 0.0
  %375 = vmatprep.subr.mxu0 0.0
  %376 = vmatpush1.msra.mxu0 0.0
  %377 = vmatprep.mubr.f32.mxu0 0.0
  %378 = vmatmul.mubr.f32.gmra.mrb[0].mxu0 %v312
  %v379 = vpop.f32.mrb[0].mxu0
  %v380 = vadd.f32 0.0, %v379
  %v381 = vpop.f32.mrb[0].mxu0
  %382 = vdwg.mxu0
  %v383 = vadd.f32 %v130, %v380
  %v384 = vmax.f32 %v383, 0.0
  %385 = vmatprep.subr.mxu0 0.0
  %386 = vmatpush1.msra.mxu0 %v153
  %387 = vmatprep.subr.mxu0 0.0
  %388 = vmatpush1.msra.mxu0 %v154
  %389 = vmatprep.subr.mxu0 0.0
  %390 = vmatpush1.msra.mxu0 %v155
  %391 = vmatprep.subr.mxu0 0.0
  %392 = vmatpush1.msra.mxu0 %v156
  %393 = vmatprep.subr.mxu0 0.0
  %394 = vmatpush1.msra.mxu0 %v157
  %395 = vmatprep.subr.mxu0 0.0
  %396 = vmatpush1.msra.mxu0 %v158
  %397 = vmatprep.subr.mxu0 0.0
  %398 = vmatpush1.msra.mxu0 %v159
  %399 = vmatprep.subr.mxu0 0.0
  %400 = vmatpush1.msra.mxu0 %v160
  %401 = vmatprep.subr.mxu0 0.0
  %402 = vmatpush1.msra.mxu0 %v161
  %403 = vmatprep.subr.mxu0 0.0
  %404 = vmatpush1.msra.mxu0 %v162
  %405 = vmatprep.subr.mxu0 0.0
  %406 = vmatpush1.msra.mxu0 %v163
  %407 = vmatprep.subr.mxu0 0.0
  %408 = vmatpush1.msra.mxu0 %v164
  %409 = vmatprep.subr.mxu0 0.0
  %410 = vmatpush1.msra.mxu0 %v165
  %411 = vmatprep.subr.mxu0 0.0
  %412 = vmatpush1.msra.mxu0 %v166
  %413 = vmatprep.subr.mxu0 0.0
  %414 = vmatpush1.msra.mxu0 %v167
  %415 = vmatprep.subr.mxu0 0.0
  %416 = vmatpush1.msra.mxu0 %v168
  %417 = vmatprep.subr.mxu0 0.0
  %418 = vmatpush1.msra.mxu0 0.0
  %419 = vmatprep.subr.mxu0 0.0
  %420 = vmatpush1.msra.mxu0 0.0
  %421 = vmatprep.subr.mxu0 0.0
  %422 = vmatpush1.msra.mxu0 0.0
  %423 = vmatprep.subr.mxu0 0.0
  %424 = vmatpush1.msra.mxu0 0.0
  %425 = vmatprep.subr.mxu0 0.0
  %426 = vmatpush1.msra.mxu0 0.0
  %427 = vmatprep.subr.mxu0 0.0
  %428 = vmatpush1.msra.mxu0 0.0
  %429 = vmatprep.subr.mxu0 0.0
  %430 = vmatpush1.msra.mxu0 0.0
  %431 = vmatprep.subr.mxu0 0.0
  %432 = vmatpush1.msra.mxu0 0.0
  %433 = vmatprep.subr.mxu0 0.0
  %434 = vmatpush1.msra.mxu0 0.0
  %435 = vmatprep.subr.mxu0 0.0
  %436 = vmatpush1.msra.mxu0 0.0
  %437 = vmatprep.subr.mxu0 0.0
  %438 = vmatpush1.msra.mxu0 0.0
  %439 = vmatprep.subr.mxu0 0.0
  %440 = vmatpush1.msra.mxu0 0.0
  %441 = vmatprep.subr.mxu0 0.0
  %442 = vmatpush1.msra.mxu0 0.0
  %443 = vmatprep.subr.mxu0 0.0
  %444 = vmatpush1.msra.mxu0 0.0
  %445 = vmatprep.subr.mxu0 0.0
  %446 = vmatpush1.msra.mxu0 0.0
  %447 = vmatprep.subr.mxu0 0.0
  %448 = vmatpush1.msra.mxu0 0.0
  %449 = vmatprep.mubr.f32.mxu0 0.0
  %450 = vmatmul.mubr.f32.gmra.mrb[0].mxu0 %v384
  %v451 = vpop.f32.mrb[0].mxu0
  %v452 = vadd.f32 0.0, %v451
  %v453 = vpop.f32.mrb[0].mxu0
  %454 = vdwg.mxu0
  %v455 = vadd.f32 %v135, %v452
  %v456 = vmax.f32 %v455, 0.0
  %457 = vmatprep.subr.mxu0 0.0
  %458 = vmatpush1.msra.mxu0 %v153
  %459 = vmatprep.subr.mxu0 0.0
  %460 = vmatpush1.msra.mxu0 %v154
  %461 = vmatprep.subr.mxu0 0.0
  %462 = vmatpush1.msra.mxu0 %v155
  %463 = vmatprep.subr.mxu0 0.0
  %464 = vmatpush1.msra.mxu0 %v156
  %465 = vmatprep.subr.mxu0 0.0
  %466 = vmatpush1.msra.mxu0 %v157
  %467 = vmatprep.subr.mxu0 0.0
  %468 = vmatpush1.msra.mxu0 %v158
  %469 = vmatprep.subr.mxu0 0.0
  %470 = vmatpush1.msra.mxu0 %v159
  %471 = vmatprep.subr.mxu0 0.0
  %472 = vmatpush1.msra.mxu0 %v160
  %473 = vmatprep.subr.mxu0 0.0
  %474 = vmatpush1.msra.mxu0 %v161
  %475 = vmatprep.subr.mxu0 0.0
  %476 = vmatpush1.msra.mxu0 %v162
  %477 = vmatprep.subr.mxu0 0.0
  %478 = vmatpush1.msra.mxu0 %v163
  %479 = vmatprep.subr.mxu0 0.0
  %480 = vmatpush1.msra.mxu0 %v164
  %481 = vmatprep.subr.mxu0 0.0
  %482 = vmatpush1.msra.mxu0 %v165
  %483 = vmatprep.subr.mxu0 0.0
  %484 = vmatpush1.msra.mxu0 %v166
  %485 = vmatprep.subr.mxu0 0.0
  %486 = vmatpush1.msra.mxu0 %v167
  %487 = vmatprep.subr.mxu0 0.0
  %488 = vmatpush1.msra.mxu0 %v168
  %489 = vmatprep.subr.mxu0 0.0
  %490 = vmatpush1.msra.mxu0 0.0
  %491 = vmatprep.subr.mxu0 0.0
  %492 = vmatpush1.msra.mxu0 0.0
  %493 = vmatprep.subr.mxu0 0.0
  %494 = vmatpush1.msra.mxu0 0.0
  %495 = vmatprep.subr.mxu0 0.0
  %496 = vmatpush1.msra.mxu0 0.0
  %497 = vmatprep.subr.mxu0 0.0
  %498 = vmatpush1.msra.mxu0 0.0
  %499 = vmatprep.subr.mxu0 0.0
  %500 = vmatpush1.msra.mxu0 0.0
  %501 = vmatprep.subr.mxu0 0.0
  %502 = vmatpush1.msra.mxu0 0.0
  %503 = vmatprep.subr.mxu0 0.0
  %504 = vmatpush1.msra.mxu0 0.0
  %505 = vmatprep.subr.mxu0 0.0
  %506 = vmatpush1.msra.mxu0 0.0
  %507 = vmatprep.subr.mxu0 0.0
  %508 = vmatpush1.msra.mxu0 0.0
  %509 = vmatprep.subr.mxu0 0.0
  %510 = vmatpush1.msra.mxu0 0.0
  %511 = vmatprep.subr.mxu0 0.0
  %512 = vmatpush1.msra.mxu0 0.0
  %513 = vmatprep.subr.mxu0 0.0
  %514 = vmatpush1.msra.mxu0 0.0
  %515 = vmatprep.subr.mxu0 0.0
  %516 = vmatpush1.msra.mxu0 0.0
  %517 = vmatprep.subr.mxu0 0.0
  %518 = vmatpush1.msra.mxu0 0.0
  %519 = vmatprep.subr.mxu0 0.0
  %520 = vmatpush1.msra.mxu0 0.0
  %521 = vmatprep.mubr.f32.mxu0 0.0
  %522 = vmatmul.mubr.f32.gmra.mrb[0].mxu0 %v456
  %v523 = vpop.f32.mrb[0].mxu0
  %v524 = vadd.f32 0.0, %v523
  %v525 = vpop.f32.mrb[0].mxu0
  %526 = vdwg.mxu0
  %v527 = vadd.f32 %v140, %v524
  %v528 = vmax.f32 %v527, 0.0
  %529 = vmatprep.subr.mxu0 0.0
  %530 = vmatpush1.msra.mxu0 %v153
  %531 = vmatprep.subr.mxu0 0.0
  %532 = vmatpush1.msra.mxu0 %v154
  %533 = vmatprep.subr.mxu0 0.0
  %534 = vmatpush1.msra.mxu0 %v155
  %535 = vmatprep.subr.mxu0 0.0
  %536 = vmatpush1.msra.mxu0 %v156
  %537 = vmatprep.subr.mxu0 0.0
  %538 = vmatpush1.msra.mxu0 %v157
  %539 = vmatprep.subr.mxu0 0.0
  %540 = vmatpush1.msra.mxu0 %v158
  %541 = vmatprep.subr.mxu0 0.0
  %542 = vmatpush1.msra.mxu0 %v159
  %543 = vmatprep.subr.mxu0 0.0
  %544 = vmatpush1.msra.mxu0 %v160
  %545 = vmatprep.subr.mxu0 0.0
  %546 = vmatpush1.msra.mxu0 %v161
  %547 = vmatprep.subr.mxu0 0.0
  %548 = vmatpush1.msra.mxu0 %v162
  %549 = vmatprep.subr.mxu0 0.0
  %550 = vmatpush1.msra.mxu0 %v163
  %551 = vmatprep.subr.mxu0 0.0
  %552 = vmatpush1.msra.mxu0 %v164
  %553 = vmatprep.subr.mxu0 0.0
  %554 = vmatpush1.msra.mxu0 %v165
  %555 = vmatprep.subr.mxu0 0.0
  %556 = vmatpush1.msra.mxu0 %v166
  %557 = vmatprep.subr.mxu0 0.0
  %558 = vmatpush1.msra.mxu0 %v167
  %559 = vmatprep.subr.mxu0 0.0
  %560 = vmatpush1.msra.mxu0 %v168
  %561 = vmatprep.subr.mxu0 0.0
  %562 = vmatpush1.msra.mxu0 0.0
  %563 = vmatprep.subr.mxu0 0.0
  %564 = vmatpush1.msra.mxu0 0.0
  %565 = vmatprep.subr.mxu0 0.0
  %566 = vmatpush1.msra.mxu0 0.0
  %567 = vmatprep.subr.mxu0 0.0
  %568 = vmatpush1.msra.mxu0 0.0
  %569 = vmatprep.subr.mxu0 0.0
  %570 = vmatpush1.msra.mxu0 0.0
  %571 = vmatprep.subr.mxu0 0.0
  %572 = vmatpush1.msra.mxu0 0.0
  %573 = vmatprep.subr.mxu0 0.0
  %574 = vmatpush1.msra.mxu0 0.0
  %575 = vmatprep.subr.mxu0 0.0
  %576 = vmatpush1.msra.mxu0 0.0
  %577 = vmatprep.subr.mxu0 0.0
  %578 = vmatpush1.msra.mxu0 0.0
  %579 = vmatprep.subr.mxu0 0.0
  %580 = vmatpush1.msra.mxu0 0.0
  %581 = vmatprep.subr.mxu0 0.0
  %582 = vmatpush1.msra.mxu0 0.0
  %583 = vmatprep.subr.mxu0 0.0
  %584 = vmatpush1.msra.mxu0 0.0
  %585 = vmatprep.subr.mxu0 0.0
  %586 = vmatpush1.msra.mxu0 0.0
  %587 = vmatprep.subr.mxu0 0.0
  %588 = vmatpush1.msra.mxu0 0.0
  %589 = vmatprep.subr.mxu0 0.0
  %590 = vmatpush1.msra.mxu0 0.0
  %591 = vmatprep.subr.mxu0 0.0
  %592 = vmatpush1.msra.mxu0 0.0
  %593 = vmatprep.mubr.f32.mxu0 0.0
  %594 = vmatmul.mubr.f32.gmra.mrb[0].mxu0 %v528
  %v595 = vpop.f32.mrb[0].mxu0
  %v596 = vadd.f32 0.0, %v595
  %v597 = vpop.f32.mrb[0].mxu0
  %598 = vdwg.mxu0
  %v599 = vadd.f32 %v145, %v596
  %v600 = vmax.f32 %v599, 0.0
  %601 = vmatprep.subr.mxu0 0.0
  %602 = vmatpush1.msra.mxu0 %v153
  %603 = vmatprep.subr.mxu0 0.0
  %604 = vmatpush1.msra.mxu0 %v154
  %605 = vmatprep.subr.mxu0 0.0
  %606 = vmatpush1.msra.mxu0 %v155
  %607 = vmatprep.subr.mxu0 0.0
  %608 = vmatpush1.msra.mxu0 %v156
  %609 = vmatprep.subr.mxu0 0.0
  %610 = vmatpush1.msra.mxu0 %v157
  %611 = vmatprep.subr.mxu0 0.0
  %612 = vmatpush1.msra.mxu0 %v158
  %613 = vmatprep.subr.mxu0 0.0
  %614 = vmatpush1.msra.mxu0 %v159
  %615 = vmatprep.subr.mxu0 0.0
  %616 = vmatpush1.msra.mxu0 %v160
  %617 = vmatprep.subr.mxu0 0.0
  %618 = vmatpush1.msra.mxu0 %v161
  %619 = vmatprep.subr.mxu0 0.0
  %620 = vmatpush1.msra.mxu0 %v162
  %621 = vmatprep.subr.mxu0 0.0
  %622 = vmatpush1.msra.mxu0 %v163
  %623 = vmatprep.subr.mxu0 0.0
  %624 = vmatpush1.msra.mxu0 %v164
  %625 = vmatprep.subr.mxu0 0.0
  %626 = vmatpush1.msra.mxu0 %v165
  %627 = vmatprep.subr.mxu0 0.0
  %628 = vmatpush1.msra.mxu0 %v166
  %629 = vmatprep.subr.mxu0 0.0
  %630 = vmatpush1.msra.mxu0 %v167
  %631 = vmatprep.subr.mxu0 0.0
  %632 = vmatpush1.msra.mxu0 %v168
  %633 = vmatprep.subr.mxu0 0.0
  %634 = vmatpush1.msra.mxu0 0.0
  %635 = vmatprep.subr.mxu0 0.0
  %636 = vmatpush1.msra.mxu0 0.0
  %637 = vmatprep.subr.mxu0 0.0
  %638 = vmatpush1.msra.mxu0 0.0
  %639 = vmatprep.subr.mxu0 0.0
  %640 = vmatpush1.msra.mxu0 0.0
  %641 = vmatprep.subr.mxu0 0.0
  %642 = vmatpush1.msra.mxu0 0.0
  %643 = vmatprep.subr.mxu0 0.0
  %644 = vmatpush1.msra.mxu0 0.0
  %645 = vmatprep.subr.mxu0 0.0
  %646 = vmatpush1.msra.mxu0 0.0
  %647 = vmatprep.subr.mxu0 0.0
  %648 = vmatpush1.msra.mxu0 0.0
  %649 = vmatprep.subr.mxu0 0.0
  %650 = vmatpush1.msra.mxu0 0.0
  %651 = vmatprep.subr.mxu0 0.0
  %652 = vmatpush1.msra.mxu0 0.0
  %653 = vmatprep.subr.mxu0 0.0
  %654 = vmatpush1.msra.mxu0 0.0
  %655 = vmatprep.subr.mxu0 0.0
  %656 = vmatpush1.msra.mxu0 0.0
  %657 = vmatprep.subr.mxu0 0.0
  %658 = vmatpush1.msra.mxu0 0.0
  %659 = vmatprep.subr.mxu0 0.0
  %660 = vmatpush1.msra.mxu0 0.0
  %661 = vmatprep.subr.mxu0 0.0
  %662 = vmatpush1.msra.mxu0 0.0
  %663 = vmatprep.subr.mxu0 0.0
  %664 = vmatpush1.msra.mxu0 0.0
  %665 = vmatprep.mubr.f32.mxu0 0.0
  %666 = vmatmul.mubr.f32.gmra.mrb[0].mxu0 %v600
  %v667 = vpop.f32.mrb[0].mxu0
  %v668 = vadd.f32 0.0, %v667
  %v669 = vpop.f32.mrb[0].mxu0
  %670 = vdwg.mxu0
  %v671 = vadd.f32 %v150, %v668
  %v672 = vmax.f32 %v671, 0.0
  %v673 = vld [vmem:[%s4] sm:$0xff]
  %v674 = vld [vmem:[%s4 + $0x8] sm:$0xff]
  %v675 = vld [vmem:[%s4 + $0x10] sm:$0xff]
  %v676 = vld [vmem:[%s4 + $0x18] sm:$0xff]
  %v677 = vld [vmem:[%s4 + $0x20] sm:$0xff]
  %v678 = vld [vmem:[%s4 + $0x28] sm:$0xff]
  %v679 = vld [vmem:[%s4 + $0x30] sm:$0xff]
  %v680 = vld [vmem:[%s4 + $0x38] sm:$0xff]
  %v681 = vld [vmem:[%s4 + $0x40] sm:$0xff]
  %v682 = vld [vmem:[%s4 + $0x48] sm:$0xff]
  %v683 = vld [vmem:[%s4 + $0x50] sm:$0xff]
  %v684 = vld [vmem:[%s4 + $0x58] sm:$0xff]
  %v685 = vld [vmem:[%s4 + $0x60] sm:$0xff]
  %v686 = vld [vmem:[%s4 + $0x68] sm:$0xff]
  %v687 = vld [vmem:[%s4 + $0x70] sm:$0xff]
  %v688 = vld [vmem:[%s4 + $0x78] sm:$0xff]
  %v689 = vld [vmem:[%s5] sm:$0x1]
  %v691 = vlaneseq
  %v692 = vshrl.u32 %v691, 7
  %v693 = vsub.s32 0, %v692
  %v694 = vrot.slane %v689, %v693
  %696 = vmatprep.subr.mxu0 0.0
  %697 = vmatpush1.msra.mxu0 %v673
  %698 = vmatprep.subr.mxu0 0.0
  %699 = vmatpush1.msra.mxu0 %v674
  %700 = vmatprep.subr.mxu0 0.0
  %701 = vmatpush1.msra.mxu0 %v675
  %702 = vmatprep.subr.mxu0 0.0
  %703 = vmatpush1.msra.mxu0 %v676
  %704 = vmatprep.subr.mxu0 0.0
  %705 = vmatpush1.msra.mxu0 %v677
  %706 = vmatprep.subr.mxu0 0.0
  %707 = vmatpush1.msra.mxu0 %v678
  %708 = vmatprep.subr.mxu0 0.0
  %709 = vmatpush1.msra.mxu0 %v679
  %710 = vmatprep.subr.mxu0 0.0
  %711 = vmatpush1.msra.mxu0 %v680
  %712 = vmatprep.subr.mxu0 0.0
  %713 = vmatpush1.msra.mxu0 %v681
  %714 = vmatprep.subr.mxu0 0.0
  %715 = vmatpush1.msra.mxu0 %v682
  %716 = vmatprep.subr.mxu0 0.0
  %717 = vmatpush1.msra.mxu0 %v683
  %718 = vmatprep.subr.mxu0 0.0
  %719 = vmatpush1.msra.mxu0 %v684
  %720 = vmatprep.subr.mxu0 0.0
  %721 = vmatpush1.msra.mxu0 %v685
  %722 = vmatprep.subr.mxu0 0.0
  %723 = vmatpush1.msra.mxu0 %v686
  %724 = vmatprep.subr.mxu0 0.0
  %725 = vmatpush1.msra.mxu0 %v687
  %726 = vmatprep.subr.mxu0 0.0
  %727 = vmatpush1.msra.mxu0 %v688
  %728 = vmatprep.subr.mxu0 0.0
  %729 = vmatpush1.msra.mxu0 0.0
  %730 = vmatprep.subr.mxu0 0.0
  %731 = vmatpush1.msra.mxu0 0.0
  %732 = vmatprep.subr.mxu0 0.0
  %733 = vmatpush1.msra.mxu0 0.0
  %734 = vmatprep.subr.mxu0 0.0
  %735 = vmatpush1.msra.mxu0 0.0
  %736 = vmatprep.subr.mxu0 0.0
  %737 = vmatpush1.msra.mxu0 0.0
  %738 = vmatprep.subr.mxu0 0.0
  %739 = vmatpush1.msra.mxu0 0.0
  %740 = vmatprep.subr.mxu0 0.0
  %741 = vmatpush1.msra.mxu0 0.0
  %742 = vmatprep.subr.mxu0 0.0
  %743 = vmatpush1.msra.mxu0 0.0
  %744 = vmatprep.subr.mxu0 0.0
  %745 = vmatpush1.msra.mxu0 0.0
  %746 = vmatprep.subr.mxu0 0.0
  %747 = vmatpush1.msra.mxu0 0.0
  %748 = vmatprep.subr.mxu0 0.0
  %749 = vmatpush1.msra.mxu0 0.0
  %750 = vmatprep.subr.mxu0 0.0
  %751 = vmatpush1.msra.mxu0 0.0
  %752 = vmatprep.subr.mxu0 0.0
  %753 = vmatpush1.msra.mxu0 0.0
  %754 = vmatprep.subr.mxu0 0.0
  %755 = vmatpush1.msra.mxu0 0.0
  %756 = vmatprep.subr.mxu0 0.0
  %757 = vmatpush1.msra.mxu0 0.0
  %758 = vmatprep.subr.mxu0 0.0
  %759 = vmatpush1.msra.mxu0 0.0
  %760 = vmatprep.mubr.f32.mxu0 0.0
  %761 = vmatmul.mubr.f32.gmra.mrb[0].mxu0 %v672
  %v762 = vpop.f32.mrb[0].mxu0
  %v763 = vadd.f32 %v694, %v762
  %v764 = vpop.f32.mrb[0].mxu0
  %765 = vdwg.mxu0
  %766 = vst [vmem:[%s6] sm:$0xff] %v763
  // Predicated region
  $region26: #{model_forward.1} parent=0 // pred_check
    _
  $region27: #{model_forward.1} parent=0 // pred_check_branch
    %768 = sbr.rel (0) target = $region29
  $region28: #{model_forward.1} parent=0 // pred_region
    _
  $region29: #{model_forward.1} parent=0 // pred_fallthru
    _
  // Predicated region
  $region30: #{model_forward.1} parent=0 // pred_check
    _
  $region31: #{model_forward.1} parent=0 // pred_check_branch
    %770 = sbr.rel (0) target = $region33
  $region32: #{model_forward.1} parent=0 // pred_region
    _
  $region33: #{model_forward.1} parent=0 // pred_fallthru
    _

</llo_original>
